<compile_context>
chip_gen: v7x
topology: tpu7x:2x2x1
jax: 0.10.0
libtpu: 0.0.40
codegen_flags: <defaults>
</compile_context>

<pallas_src>
import numpy as np

import jax
import jax.numpy as jnp
from jax.experimental import pallas as pl
from jax.experimental.pallas import tpu as pltpu


# ----------------------------- Pallas kernel -------------------------------

def _sudoku_block_kernel(rowkey_ref, colkey_ref, sign_ref, a_ref):
    """One (nm^2, TV) tile of A for one of the 8 constraint blocks.

    rowkey_ref : (nm^2, 1) int32 - packed care-masked fields per constraint row
    colkey_ref : (1, TV)   int32 - packed care-masked fields per variable column
    sign_ref   : (1, 1)    f32   - +1 for the first 4 blocks, -1 for the last 4
    a_ref      : (nm^2, TV) f32  - output tile of A
    """
    mask = rowkey_ref[...] == colkey_ref[...]          # (nm^2, TV) bool
    a_ref[...] = jnp.where(mask, sign_ref[...], jnp.float32(0.0)).astype(a_ref.dtype)


# ------------------------- trace-time key tables ---------------------------

def _build_keys(n, m):
    """Per-block packed keys (numpy, static).

    Fields are (b, r, s, c, v) with ranges (m, n, n, m, nm).  For each
    constraint type, "don't care" fields are zeroed on BOTH the row and the
    column side before packing, so key equality <=> all cared fields match.
    """
    nm = n * m

    # Column (variable) field values; flatten order matches torch's
    # view(-1, num_vars) of the trailing (m, n, n, m, nm) axes.
    rb, rr, rs, rc, rv = np.meshgrid(
        np.arange(m), np.arange(n), np.arange(n), np.arange(m), np.arange(nm),
        indexing="ij")
    var = np.stack([rb.ravel(), rr.ravel(), rs.ravel(), rc.ravel(), rv.ravel()],
                   axis=0).astype(np.int64)                              # (5, V)

    # Constraint-row field values per type, in torch's row order.
    def _rows(ranges, slots):
        grids = np.meshgrid(*[np.arange(k) for k in ranges], indexing="ij")
        fields = [np.zeros_like(grids[0]) for _ in range(5)]
        for g, s in zip(grids, slots):
            fields[s] = g
        return np.stack([f.ravel() for f in fields], axis=0)             # (5, nm^2)

    # field slots: 0=b, 1=r, 2=s, 3=c, 4=v
    row_fields = {
        "row": _rows((n, m, nm), (2, 3, 4)),      # (ls, lc, lv)
        "col": _rows((m, n, nm), (0, 1, 4)),      # (lb, lr, lv)
        "box": _rows((m, n, nm), (0, 2, 4)),      # (lb, ls, lv)
        "hot": _rows((m, n, n, m), (0, 1, 2, 3)), # (lb, lr, ls, lc)
    }
    care = {
        "row": np.array([0, 0, 1, 1, 1], np.int64),
        "col": np.array([1, 1, 0, 0, 1], np.int64),
        "box": np.array([1, 0, 1, 0, 1], np.int64),
        "hot": np.array([1, 1, 1, 1, 0], np.int64),
    }
    base = np.array([n * n * m * nm, n * m * nm, m * nm, nm, 1], np.int64)  # pack bases

    types = ("row", "col", "box", "hot")
    colkeys = np.stack(
        [(base[:, None] * (care[t][:, None] * var)).sum(0) for t in types], 0)
    rowkeys = np.stack(
        [(base[:, None] * (care[t][:, None] * row_fields[t])).sum(0) for t in types], 0)
    return rowkeys.astype(np.int32), colkeys.astype(np.int32)   # (4, nm^2), (4, V)


def _pick_v_tile(nm2, V, budget_bytes=8 << 20):
    """Whole variable axis if the (nm^2, V) f32 tile fits ~8 MiB, else the
    largest multiple-of-128 slab under the budget (keeps v7x VMEM happy)."""
    if nm2 * V * 4 <= budget_bytes:
        return V
    tv = (budget_bytes // (nm2 * 4)) // 128 * 128
    return max(int(tv), 128)


# ------------------------------ A/b builder --------------------------------

def _make_ab_single(box_shape, out_dtype=jnp.float32):
    """Build the single-copy (R, V) A matrix and (R,) b vector with Pallas."""
    n, m = box_shape
    nm = n * m
    nm2 = nm * nm
    R = 8 * nm2
    V = nm ** 3

    rowkeys4, colkeys4 = _build_keys(n, m)
    # 8 blocks in torch order: [row, col, box, hot, -row, -col, -box, -hot]
    rowkeys8 = np.concatenate([rowkeys4, rowkeys4], 0).reshape(8, nm2, 1)
    colkeys8 = np.concatenate([colkeys4, colkeys4], 0).reshape(8, 1, V)
    sign8 = np.concatenate([np.ones(4, np.float32),
                            -np.ones(4, np.float32)]).reshape(8, 1, 1)

    TV = _pick_v_tile(nm2, V)
    nv = pl.cdiv(V, TV)

    a8 = pl.pallas_call(
        _sudoku_block_kernel,
        out_shape=jax.ShapeDtypeStruct((8, nm2, V), out_dtype),
        grid=(8, nv),
        in_specs=[
            pl.BlockSpec((None, nm2, 1), lambda bi, vi: (bi, 0, 0)),
            pl.BlockSpec((None, 1, TV), lambda bi, vi: (bi, 0, vi)),
            pl.BlockSpec((None, 1, 1), lambda bi, vi: (bi, 0, 0)),
        ],
        out_specs=pl.BlockSpec((None, nm2, TV), lambda bi, vi: (bi, 0, vi)),
        compiler_params=pltpu.CompilerParams(
            dimension_semantics=("parallel", "parallel"),
            vmem_limit_bytes=32 << 20),
    )(jnp.asarray(rowkeys8), jnp.asarray(colkeys8), jnp.asarray(sign8))

    a = a8.reshape(R, V)                                   # free, row-major
    b = jnp.concatenate([-jnp.ones((4 * nm2,), out_dtype),
                         jnp.ones((4 * nm2,), out_dtype)])
    return a, b


# ------------------------------ encoder class ------------------------------

class SudokuABEncoderPallas:
    """Mirrors SudokuABEncoder: lazy make() + expand-over-batch forward()."""

    def __init__(self, box_shape, out_dtype=jnp.float32):
        self.box_shape = box_shape
        self.out_dtype = out_dtype   # values are exactly {-1,0,+1}; bf16 is lossless
        self.a = None
        self.b = None

    def make(self):
        self.a, self.b = _make_ab_single(self.box_shape, self.out_dtype)

    def __call__(self, x):
        batch_size = x.shape[0]
        if self.a is None:
            self.make()
        return (jnp.broadcast_to(self.a, (batch_size,) + self.a.shape),
                jnp.broadcast_to(self.b, (batch_size,) + self.b.shape))


def sudoku_ab_forward(x, box_shape):
    """Functional wrapper (builds A/b each call; prefer the class for caching)."""
    return SudokuABEncoderPallas(box_shape)(x)


# --------------------------- numpy reference --------------------------------

def sudoku_ab_reference(batch_size, box_shape):
    """Direct port of SudokuABEncoder.make()/forward() to numpy."""
    n, m = box_shape
    nm = n * m
    num_vars = nm ** 3
    ar = np.arange
    lb = ar(m).reshape(-1, 1, 1, 1, 1, 1, 1, 1, 1, 1)
    lr = ar(n).reshape(1, -1, 1, 1, 1, 1, 1, 1, 1, 1)
    ls = ar(n).reshape(1, 1, -1, 1, 1, 1, 1, 1, 1, 1)
    lc = ar(m).reshape(1, 1, 1, -1, 1, 1, 1, 1, 1, 1)
    lv = ar(nm).reshape(1, 1, 1, 1, -1, 1, 1, 1, 1, 1)
    rb = ar(m).reshape(1, 1, 1, 1, 1, -1, 1, 1, 1, 1)
    rr = ar(n).reshape(1, 1, 1, 1, 1, 1, -1, 1, 1, 1)
    rs = ar(n).reshape(1, 1, 1, 1, 1, 1, 1, -1, 1, 1)
    rc = ar(m).reshape(1, 1, 1, 1, 1, 1, 1, 1, -1, 1)
    rv = ar(nm).reshape(1, 1, 1, 1, 1, 1, 1, 1, 1, -1)
    shapes = {
        "row": (1, 1, n, m, nm, m, n, n, m, nm),
        "col": (m, n, 1, 1, nm, m, n, n, m, nm),
        "box": (m, 1, n, 1, nm, m, n, n, m, nm),
        "hot": (m, n, n, m, 1, m, n, n, m, nm),
    }
    idx = {
        "row": (ls == rs) & (lc == rc) & (lv == rv),
        "col": (lb == rb) & (lr == rr) & (lv == rv),
        "box": (lb == rb) & (ls == rs) & (lv == rv),
        "hot": (lb == rb) & (lr == rr) & (ls == rs) & (lc == rc),
    }
    blocks = [np.broadcast_to(idx[t], shapes[t]).astype(np.float32).reshape(-1, num_vars)
              for t in ("row", "col", "box", "hot")]
    a = np.concatenate(blocks, axis=0)
    b = -np.ones((a.shape[0],), np.float32)
    A = np.concatenate([a, -a], axis=0)
    B = np.concatenate([b, -b], axis=0)
    return (np.broadcast_to(A, (batch_size,) + A.shape),
            np.broadcast_to(B, (batch_size,) + B.shape))


# ---------------------------------- main -------------------------------------

if __name__ == "__main__":
    box_shape = (2, 2)          # (n, m) -> nm = 4: A is (B, 128, 64), b is (B, 128)
    batch = 2

    key = jax.random.PRNGKey(0)
    # forward() only consumes x.shape[0]; use a small Sudoku-candidate tensor.
    x = jax.random.normal(key, (batch, 4, 4, 4), dtype=jnp.float32)

    enc = SudokuABEncoderPallas(box_shape)
    a_out, b_out = jax.block_until_ready(enc(x))

    a_ref, b_ref = sudoku_ab_reference(batch, box_shape)

    assert a_out.shape == a_ref.shape, (a_out.shape, a_ref.shape)
    assert b_out.shape == b_ref.shape, (b_out.shape, b_ref.shape)
    assert np.all(np.isfinite(np.asarray(a_out)))
    assert np.array_equal(np.asarray(a_out), a_ref), "A mismatch vs reference"
    assert np.array_equal(np.asarray(b_out), b_ref), "b mismatch vs reference"

    print("KERNEL_OK")
</pallas_src>

<mosaic_0001>
module attributes {stable_mosaic.version = 11 : i64} {
  func.func @_sudoku_block_kernel(%arg0: i32, %arg1: i32, %arg2: memref<1x16x1xi32, #tpu.memory_space<vmem>>, %arg3: memref<1x1x64xi32, #tpu.memory_space<vmem>>, %arg4: memref<1x1x1xf32, #tpu.memory_space<vmem>>, %arg5: memref<1x16x64xf32, #tpu.memory_space<vmem>>) attributes {dimension_semantics = [#tpu.dimension_semantics<parallel>, #tpu.dimension_semantics<parallel>], iteration_bounds = array<i64: 8, 1>, scalar_prefetch = 0 : i64, scratch_operands = 0 : i64, tpu.core_type = #tpu.core_type<tc>, window_params = [{transform_indices = @transform_0, window_bounds = array<i64: 1, 16, 1>}, {transform_indices = @transform_1, window_bounds = array<i64: 1, 1, 64>}, {transform_indices = @transform_2, window_bounds = array<i64: 1, 1, 1>}, {transform_indices = @transform_3, window_bounds = array<i64: 1, 16, 64>}]} {
    %c0 = arith.constant 0 : index
    %c0_0 = arith.constant 0 : index
    %c0_1 = arith.constant 0 : index
    %0 = vector.load %arg2[%c0, %c0_0, %c0_1] : memref<1x16x1xi32, #tpu.memory_space<vmem>>, vector<1x16x1xi32>
    %1 = vector.shape_cast %0 : vector<1x16x1xi32> to vector<16x1xi32>
    %c0_2 = arith.constant 0 : index
    %c0_3 = arith.constant 0 : index
    %c0_4 = arith.constant 0 : index
    %2 = vector.load %arg3[%c0_2, %c0_3, %c0_4] : memref<1x1x64xi32, #tpu.memory_space<vmem>>, vector<1x1x64xi32>
    %3 = vector.shape_cast %2 : vector<1x1x64xi32> to vector<1x64xi32>
    %4 = vector.broadcast %1 : vector<16x1xi32> to vector<16x64xi32>
    %5 = vector.broadcast %3 : vector<1x64xi32> to vector<16x64xi32>
    %6 = arith.cmpi eq, %4, %5 : vector<16x64xi32>
    %c0_5 = arith.constant 0 : index
    %c0_6 = arith.constant 0 : index
    %c0_7 = arith.constant 0 : index
    %7 = vector.load %arg4[%c0_5, %c0_6, %c0_7] : memref<1x1x1xf32, #tpu.memory_space<vmem>>, vector<1x1x1xf32>
    %8 = vector.shape_cast %7 : vector<1x1x1xf32> to vector<1x1xf32>
    %cst = arith.constant 0.000000e+00 : f32
    %9 = vector.shape_cast %8 : vector<1x1xf32> to vector<1x1xf32>
    %10 = vector.broadcast %9 : vector<1x1xf32> to vector<16x64xf32>
    %11 = vector.broadcast %cst : f32 to vector<16x64xf32>
    %12 = arith.select %6, %10, %11 : vector<16x64xi1>, vector<16x64xf32>
    %c0_8 = arith.constant 0 : index
    %c0_9 = arith.constant 0 : index
    %c0_10 = arith.constant 0 : index
    %13 = vector.load %arg5[%c0_8, %c0_9, %c0_10] : memref<1x16x64xf32, #tpu.memory_space<vmem>>, vector<1x16x64xf32>
    %14 = vector.shape_cast %13 : vector<1x16x64xf32> to vector<16x64xf32>
    %15 = vector.shape_cast %12 : vector<16x64xf32> to vector<1x16x64xf32>
    tpu.vector_store %arg5[%c0_8, %c0_9, %c0_10], %15 {strides = array<i32>} : memref<1x16x64xf32, #tpu.memory_space<vmem>>, vector<1x16x64xf32>,
    return
  }
  func.func @transform_0(%arg0: i32, %arg1: i32) -> (i32, i32, i32) {
    %c0_i32 = arith.constant 0 : i32
    %c0_i32_0 = arith.constant 0 : i32
    %c0_i32_1 = arith.constant 0 : i32
    return %arg0, %c0_i32, %c0_i32_0 : i32, i32, i32
  }
  func.func @transform_1(%arg0: i32, %arg1: i32) -> (i32, i32, i32) {
    %c0_i32 = arith.constant 0 : i32
    %c0_i32_0 = arith.constant 0 : i32
    return %arg0, %c0_i32, %arg1 : i32, i32, i32
  }
  func.func @transform_2(%arg0: i32, %arg1: i32) -> (i32, i32, i32) {
    %c0_i32 = arith.constant 0 : i32
    %c0_i32_0 = arith.constant 0 : i32
    %c0_i32_1 = arith.constant 0 : i32
    return %arg0, %c0_i32, %c0_i32_0 : i32, i32, i32
  }
  func.func @transform_3(%arg0: i32, %arg1: i32) -> (i32, i32, i32) {
    %c0_i32 = arith.constant 0 : i32
    %c0_i32_0 = arith.constant 0 : i32
    return %arg0, %c0_i32, %arg1 : i32, i32, i32
  }
}

</mosaic_0001>

<llo_original>
// kernel: tpu_custom_call.1
$region0: #{tpu_custom_call.1}
  #allocation0 [shape = 'u32[]', space=smem, size = 0x4, offset = 0x4, fixed_abs, tag = 'smem constant byte address 0x4 - core index']
  #allocation1 [shape = 'u32[144,128]{1,0:T(1,128)}', space=vmem, size = 0x12000, scoped, tag = 'internal scratch']
  %s0 = inlined_call_operand.vmem [shape: s32[8,16,1], index: 0, kind: input, shape index: {}]
  %s1 = inlined_call_operand.vmem [shape: s32[8,1,64], index: 1, kind: input, shape index: {}]
  %s2 = inlined_call_operand.vmem [shape: f32[8,1,1], index: 2, kind: input, shape index: {}]
  %s3 = inlined_call_operand.hbm [shape: f32[8,16,64], index: 3, kind: output, shape index: {}]
  %s4 = sld [smem:[#allocation0]]
  $region45: #{tpu_custom_call.1} parent=0
    _
  %s6 = ssub.s32 1, %s4
  %s7 = scalar_select 0, %s6, %s4
  $region1: #{tpu_custom_call.1} parent=0
    #allocation2 [shape = 'u8[16384]{0}', space=vmem, size = 0x4000, scoped, tag = 'output window, operand 0']
    #allocation3 [shape = 's32[2]{0}', space=sflag, size = 0x8, scoped, tag = 'scoped memory for tpu_custom_call.1']
    %8 = vsyncpa [#allocation3], 0
    %s9 = scalar_lea.sflag [#allocation3], 1
    %10 = vsyncpa %s9, 0
    loop: start=0, step=1, limit=10
    $region2: #{tpu_custom_call.1} parent=1 // loop_pre_header
      _
    $region3: #{tpu_custom_call.1} parent=1 // loop_header
      %s12 = sphi 0, %s16
      %p13 = scmp.ge.s32.totalorder %s12, 10
      %s19 = sphi 0, %s31
      %s20 = sphi 0, %s27
      %s21 = sphi 0, %s19
      %s22 = sphi 0, %s20
      %s23 = sphi 0, %s21
      %s24 = sphi 0, %s22
      %s34 = sphi 0, %s36
      %s37 = sphi 0, %s34
      %s38 = sphi 0, %s37
      %s54 = sphi 0, %s38
      %s62 = sphi 0, %s64
      %s65 = sphi 0, %s62
      %s66 = sphi 0, %s65
      %s82 = sphi 0, %s66
      %s88 = sphi 0, %s90
      %s91 = sphi 0, %s88
      %s92 = sphi 0, %s91
      %s108 = sphi 0, %s92
      %s116 = sphi 0, %s118
      %s119 = sphi 0, %s116
      %s120 = sphi 0, %s119
      %s136 = sphi 0, %s120
    $region4: #{tpu_custom_call.1} parent=1 // loop_header_branch
      %15 = sbr.rel (%p13) target = $region8
    $region5: #{tpu_custom_call.1} parent=1 // loop_body
      %s17 = ssub.s32 %s12, 1
      %s18 = ssub.s32 %s12, 2
      %s25 = sadd.s32 1, %s20
      %p26 = scmp.ge.s32.totalorder %s25, 1
      %s27 = scalar_select %p26, 0, %s25
      %s28 = sadd.s32 1, %s19
      %s29 = scalar_select %p26, %s28, %s19
      %p30 = scmp.ge.s32.totalorder %s29, 8
      %s31 = scalar_select %p30, 0, %s29
      %s32 = ssub.s32 %s19, %s31
      %p33 = scmp.eq.s32.totalorder %s32, 0
      %s35 = sadd.s32 %s34, 1
      %s36 = scalar_select %p33, %s34, %s35
      %p39 = pneg %p33
      %p40 = scmp.eq.s32.totalorder %s12, 7
      %p41 = por %p39, %p40
      %p42 = scmp.ne.s32.totalorder %s34, %s37
      %p43 = scmp.eq.s32.totalorder %s12, 0
      %p44 = por %p42, %p43
      %p45 = scmp.ne.s32.totalorder %s34, %s37
      %p46 = scmp.eq.s32.totalorder %s17, 7
      %p47 = por %p45, %p46
      %p48 = scmp.ne.s32.totalorder %s37, %s38
      %p49 = scmp.eq.s32.totalorder %s17, 0
      %p50 = por %p48, %p49
      %p51 = scmp.ne.s32.totalorder %s37, %s38
      %p52 = scmp.eq.s32.totalorder %s18, 7
      %p53 = por %p51, %p52
      %p55 = scmp.ne.s32.totalorder %s38, %s54
      %p56 = scmp.eq.s32.totalorder %s18, 0
      %p57 = por %p55, %p56
      %s58 = ssub.s32 %s19, %s31
      %s59 = ssub.s32 %s20, %s27
      %s60 = sor.u32 %s58, %s59
      %p61 = scmp.eq.s32.totalorder %s60, 0
      %s63 = sadd.s32 %s62, 1
      %s64 = scalar_select %p61, %s62, %s63
      %p67 = pneg %p61
      %p68 = scmp.eq.s32.totalorder %s12, 7
      %p69 = por %p67, %p68
      %p70 = scmp.ne.s32.totalorder %s62, %s65
      %p71 = scmp.eq.s32.totalorder %s12, 0
      %p72 = por %p70, %p71
      %p73 = scmp.ne.s32.totalorder %s62, %s65
      %p74 = scmp.eq.s32.totalorder %s17, 7
      %p75 = por %p73, %p74
      %p76 = scmp.ne.s32.totalorder %s65, %s66
      %p77 = scmp.eq.s32.totalorder %s17, 0
      %p78 = por %p76, %p77
      %p79 = scmp.ne.s32.totalorder %s65, %s66
      %p80 = scmp.eq.s32.totalorder %s18, 7
      %p81 = por %p79, %p80
      %p83 = scmp.ne.s32.totalorder %s66, %s82
      %p84 = scmp.eq.s32.totalorder %s18, 0
      %p85 = por %p83, %p84
      %s86 = ssub.s32 %s19, %s31
      %p87 = scmp.eq.s32.totalorder %s86, 0
      %s89 = sadd.s32 %s88, 1
      %s90 = scalar_select %p87, %s88, %s89
      %p93 = pneg %p87
      %p94 = scmp.eq.s32.totalorder %s12, 7
      %p95 = por %p93, %p94
      %p96 = scmp.ne.s32.totalorder %s88, %s91
      %p97 = scmp.eq.s32.totalorder %s12, 0
      %p98 = por %p96, %p97
      %p99 = scmp.ne.s32.totalorder %s88, %s91
      %p100 = scmp.eq.s32.totalorder %s17, 7
      %p101 = por %p99, %p100
      %p102 = scmp.ne.s32.totalorder %s91, %s92
      %p103 = scmp.eq.s32.totalorder %s17, 0
      %p104 = por %p102, %p103
      %p105 = scmp.ne.s32.totalorder %s91, %s92
      %p106 = scmp.eq.s32.totalorder %s18, 7
      %p107 = por %p105, %p106
      %p109 = scmp.ne.s32.totalorder %s92, %s108
      %p110 = scmp.eq.s32.totalorder %s18, 0
      %p111 = por %p109, %p110
      %s112 = ssub.s32 %s19, %s31
      %s113 = ssub.s32 %s20, %s27
      %s114 = sor.u32 %s112, %s113
      %p115 = scmp.eq.s32.totalorder %s114, 0
      %s117 = sadd.s32 %s116, 1
      %s118 = scalar_select %p115, %s116, %s117
      %p121 = pneg %p115
      %p122 = scmp.eq.s32.totalorder %s12, 7
      %p123 = por %p121, %p122
      %p124 = scmp.ne.s32.totalorder %s116, %s119
      %p125 = scmp.eq.s32.totalorder %s12, 0
      %p126 = por %p124, %p125
      %p127 = scmp.ne.s32.totalorder %s116, %s119
      %p128 = scmp.eq.s32.totalorder %s17, 7
      %p129 = por %p127, %p128
      %p130 = scmp.ne.s32.totalorder %s119, %s120
      %p131 = scmp.eq.s32.totalorder %s17, 0
      %p132 = por %p130, %p131
      %p133 = scmp.ne.s32.totalorder %s119, %s120
      %p134 = scmp.eq.s32.totalorder %s18, 7
      %p135 = por %p133, %p134
      %p137 = scmp.ne.s32.totalorder %s120, %s136
      %p138 = scmp.eq.s32.totalorder %s18, 0
      %p139 = por %p137, %p138
      %p140 = scmp.le.s32.totalorder 1, %s12
      %p141 = scmp.lt.s32.totalorder %s12, 9
      %p142 = pnand %p140, %p141
      %p143 = pneg %p142
      // Predicated region
      $region9: #{tpu_custom_call.1} parent=5 // pred_check
        _
      $region10: #{tpu_custom_call.1} parent=5 // pred_check_branch
        %145 = sbr.rel (%p142) target = $region12
      $region11: #{tpu_custom_call.1} parent=5 // pred_region
        %s146 = ssub.s32 %s12, 1
      $region12: #{tpu_custom_call.1} parent=5 // pred_fallthru
        _
      %p147 = scmp.lt.s32.totalorder %s12, 8
      // Predicated region
      $region13: #{tpu_custom_call.1} parent=5 // pred_check
        %p148 = pneg %p147
      $region14: #{tpu_custom_call.1} parent=5 // pred_check_branch
        %150 = sbr.rel (%p148) target = $region16
      $region15: #{tpu_custom_call.1} parent=5 // pred_region
        // Predicated region
        $region17: #{tpu_custom_call.1} parent=15 // pred_check
          %p151 = pneg %p44
        $region18: #{tpu_custom_call.1} parent=15 // pred_check_branch
          %153 = sbr.rel (%p151) target = $region20
        $region19: #{tpu_custom_call.1} parent=15 // pred_region
          %p154 = scmp.lt.s32.totalorder %s19, 7
          %s155 = scalar_select %p154, %s19, 7
          %s156 = smul.addr %s155, 2
          %s157 = smul.addr %s156, 8
          %s158 = scalar_lea.vmem %s0, %s157
        $region20: #{tpu_custom_call.1} parent=15 // pred_fallthru
          _
        // Predicated region
        $region21: #{tpu_custom_call.1} parent=15 // pred_check
          %p159 = pneg %p72
        $region22: #{tpu_custom_call.1} parent=15 // pred_check_branch
          %161 = sbr.rel (%p159) target = $region24
        $region23: #{tpu_custom_call.1} parent=15 // pred_region
          %p162 = scmp.lt.s32.totalorder %s19, 7
          %s163 = scalar_select %p162, %s19, 7
          %p164 = scmp.lt.s32.totalorder %s20, 0
          %s165 = scalar_select %p164, %s20, 0
          %s166 = sadd.s32 %s165, %s163
          %s167 = scalar_lea.vmem %s1, %s166
        $region24: #{tpu_custom_call.1} parent=15 // pred_fallthru
          _
        // Predicated region
        $region25: #{tpu_custom_call.1} parent=15 // pred_check
          %p168 = pneg %p98
        $region26: #{tpu_custom_call.1} parent=15 // pred_check_branch
          %170 = sbr.rel (%p168) target = $region28
        $region27: #{tpu_custom_call.1} parent=15 // pred_region
          %p171 = scmp.lt.s32.totalorder %s19, 7
          %s172 = scalar_select %p171, %s19, 7
          %s173 = scalar_lea.vmem %s2, %s172
        $region28: #{tpu_custom_call.1} parent=15 // pred_fallthru
          _
      $region16: #{tpu_custom_call.1} parent=5 // pred_fallthru
        _
      %p174 = scmp.le.s32.totalorder 1, %s12
      %p175 = scmp.lt.s32.totalorder %s12, 9
      %p176 = pnand %p174, %p175
      %p177 = pneg %p176
      // Predicated region
      $region29: #{tpu_custom_call.1} parent=5 // pred_check
        _
      $region30: #{tpu_custom_call.1} parent=5 // pred_check_branch
        %179 = sbr.rel (%p176) target = $region32
      $region31: #{tpu_custom_call.1} parent=5 // pred_region
        %s180 = ssub.s32 %s12, 1
        %p181 = scmp.lt.s32.totalorder %s21, 7
        %s182 = scalar_select %p181, %s21, 7
        %s183 = smul.addr %s182, 2
        %s184 = smul.addr %s183, 8
        %s185 = scalar_lea.vmem %s0, %s184
        %p186 = pneg %p50
        %p187 = pneg %p47
        %p188 = scmp.lt.s32.totalorder %s21, 7
        %s189 = scalar_select %p188, %s21, 7
        %p190 = scmp.lt.s32.totalorder %s22, 0
        %s191 = scalar_select %p190, %s22, 0
        %s192 = sadd.s32 %s191, %s189
        %s193 = scalar_lea.vmem %s1, %s192
        %p194 = pneg %p78
        %p195 = pneg %p75
        %p196 = scmp.lt.s32.totalorder %s21, 7
        %s197 = scalar_select %p196, %s21, 7
        %s198 = scalar_lea.vmem %s2, %s197
        %p199 = pneg %p104
        %p200 = pneg %p101
        %p201 = pneg %p132
        %p202 = pneg %p129
        %s203 = sand.u32 %s119, 1
        %s204 = scalar_lea.sflag [#allocation3], %s203
        %s205 = sand.u32 %s119, 1
        %s206 = smul.addr %s205, 16
        %s207 = scalar_lea.vmem [#allocation2], %s206
        %p208 = scmp.lt.s32.totalorder %s21, 7
        %s209 = scalar_select %p208, %s21, 7
        %s210 = smul.addr %s209, 2
        %s211 = smul.addr %s210, 8
        %s212 = scalar_lea.vmem %s0, %s211
        %p213 = scmp.lt.s32.totalorder %s21, 7
        %s214 = scalar_select %p213, %s21, 7
        %p215 = scmp.lt.s32.totalorder %s22, 0
        %s216 = scalar_select %p215, %s22, 0
        %s217 = sadd.s32 %s216, %s214
        %s218 = scalar_lea.vmem %s1, %s217
        %p219 = scmp.lt.s32.totalorder %s21, 7
        %s220 = scalar_select %p219, %s21, 7
        %s221 = scalar_lea.vmem %s2, %s220
        %v222 = vld [vmem:[%s212] sm:$0xff]
        %v223 = vld [vmem:[%s212 + $0x8] sm:$0xff]
        %v224 = vld [vmem:[%s218] sm:$0x1]
        %225 = vset.pattern.permute.xlu0 0
        %226 = vperm.xlu0 %225, %v222
        %v227 = vpop.permute.xlu0 %226
        %228 = vset.pattern.permute.xlu0 0
        %229 = vperm.xlu0 %228, %v223
        %v230 = vpop.permute.xlu0 %229
        %v231 = vlaneseq
        %v232 = vshrl.u32 %v231, 7
        %v233 = vsub.s32 0, %v232
        %v234 = vrot.slane %v224, %v233
        %vm235 = vcmp.eq.s32.totalorder %v227, %v234
        %vm236 = vcmp.eq.s32.totalorder %v230, %v234
        %v237 = vld [vmem:[%s221] sm:$0x1]
        %v239 = vlaneseq
        %v240 = vshrl.u32 %v239, 7
        %v241 = vsub.s32 0, %v240
        %v242 = vrot.slane %v237, %v241
        %243 = vset.pattern.permute.xlu0 0
        %244 = vperm.xlu0 %243, %v242
        %v245 = vpop.permute.xlu0 %244
        %v247 = vsel %vm235, %v245, 0.0
        %v248 = vsel %vm236, %v245, 0.0
        %vm249 = vcmask 523264
        %250 = vst.msk [vmem:[%s207] sm:$0xff] %vm249, %v247
        %251 = vst.msk [vmem:[%s207 + $0x8] sm:$0xff] %vm249, %v248
        %s252 = sand.u32 %s119, 1
        %s253 = scalar_lea.sflag [#allocation3], %s252
        %s254 = sand.u32 %s119, 1
        %s255 = smul.addr %s254, 16
        %s256 = scalar_lea.vmem [#allocation2], %s255
        // Predicated region
        $region33: #{tpu_custom_call.1} parent=31 // pred_check
          %p257 = pneg %p129
        $region34: #{tpu_custom_call.1} parent=31 // pred_check_branch
          %259 = sbr.rel (%p257) target = $region36
        $region35: #{tpu_custom_call.1} parent=31 // pred_region
          %s261 = ssub.s32 256, 256
          %262 = vsyncadd %s253, %s261
          %s263 = smul.addr %s21, 2
          %s264 = sadd.s32 %s22, %s263
          %s265 = smul.addr %s264, 128
          %s266 = scalar_lea.hbm %s3, %s265
          %s267 = sshll.u32 %s256, 4
          %s268 = int_to_ptr.vmem [resolvable:$true] %s267
          %273 = dma.vmem_to_hbm [thread:$0]  %s268, 256, %s266, %s253, 128, 128, 8
        $region36: #{tpu_custom_call.1} parent=31 // pred_fallthru
          _
      $region32: #{tpu_custom_call.1} parent=5 // pred_fallthru
        _
      %p274 = scmp.le.s32.totalorder 2, %s12
      // Predicated region
      $region37: #{tpu_custom_call.1} parent=5 // pred_check
        %p275 = pneg %p274
      $region38: #{tpu_custom_call.1} parent=5 // pred_check_branch
        %277 = sbr.rel (%p275) target = $region40
      $region39: #{tpu_custom_call.1} parent=5 // pred_region
        %s278 = ssub.s32 %s12, 2
        // Predicated region
        $region41: #{tpu_custom_call.1} parent=39 // pred_check
          %p279 = pneg %p135
        $region42: #{tpu_custom_call.1} parent=39 // pred_check_branch
          %281 = sbr.rel (%p279) target = $region44
        $region43: #{tpu_custom_call.1} parent=39 // pred_region
          %s282 = sand.u32 %s120, 1
          %s283 = scalar_lea.sflag [#allocation3], %s282
          %s284 = sand.u32 %s120, 1
          %s285 = smul.addr %s284, 16
          %s286 = scalar_lea.vmem [#allocation2], %s285
          %287 = dma.done %s283, 256
        $region44: #{tpu_custom_call.1} parent=39 // pred_fallthru
          _
      $region40: #{tpu_custom_call.1} parent=5 // pred_fallthru
        _
    $region6: #{tpu_custom_call.1} parent=1 // loop_footer
      %s16 = sadd.s32 1, %s12
    $region7: #{tpu_custom_call.1} parent=1 // loop_footer_branch
      %11 = sbr.rel target = $region3
    $region8: #{tpu_custom_call.1} parent=1 // loop_exit
      _
    %288 = vsyncpa [#allocation3], 1
    %s289 = scalar_lea.sflag [#allocation3], 1
    %290 = vsyncpa %s289, 1

</llo_original>
